<compile_context>
chip_gen: v7x
topology: tpu7x:2x2x1
jax: 0.10.0
libtpu: 0.0.40
codegen_flags: <defaults>
</compile_context>

<pallas_src>
import jax
import jax.numpy as jnp
from jax.experimental import pallas as pl
from jax.experimental.pallas import tpu as pltpu


def _round_up(x, m):
    return (x + m - 1) // m * m


def _pick_node_tile(n, target):
    """Return (tile, n_pad) with tile a multiple of 128 dividing n_pad.

    Prefer n_pad == n (no adjacency pad copy). Only pad up to the next
    multiple of 128 when n itself is not lane/sublane aligned.
    """
    if n % 128 == 0:
        t = max(128, (min(n, target) // 128) * 128)
        while t > 128 and n % t != 0:
            t -= 128
        return t, n
    n_pad = _round_up(n, 128)
    t = max(128, (min(target, n_pad) // 128) * 128)
    while t > 128 and n_pad % t != 0:
        t -= 128
    return t, n_pad


# ---------------------------------------------------------------------------
# Kernel 1: linear  h = x @ W_t + b   (W_t already transposed + lane-padded)
# ---------------------------------------------------------------------------
def linear_kernel(x_ref, wt_ref, b_ref, h_ref):
    h = jnp.dot(x_ref[...], wt_ref[...], preferred_element_type=jnp.float32)
    h_ref[...] = (h + b_ref[...]).astype(h_ref.dtype)


# ---------------------------------------------------------------------------
# Kernel 2a: aggregation  out = adj @ h,  h fully VMEM-resident
#   adj tile (tm, tk) streamed from HBM; out block is resident across k
#   (constant block index) and used directly as the f32 accumulator.
# ---------------------------------------------------------------------------
def aggregate_kernel_hres(adj_ref, h_ref, out_ref):
    k = pl.program_id(1)

    @pl.when(k == 0)
    def _():
        out_ref[...] = jnp.zeros_like(out_ref)

    tk = adj_ref.shape[1]
    start = pl.multiple_of(k * tk, tk)
    h_blk = h_ref[pl.ds(start, tk), :]
    out_ref[...] += jnp.dot(adj_ref[...], h_blk,
                            preferred_element_type=jnp.float32)


# ---------------------------------------------------------------------------
# Kernel 2b: aggregation with tiled h (fallback when h is too big for VMEM)
# ---------------------------------------------------------------------------
def aggregate_kernel_tiled(adj_ref, h_ref, out_ref):
    @pl.when(pl.program_id(1) == 0)
    def _():
        out_ref[...] = jnp.zeros_like(out_ref)

    out_ref[...] += jnp.dot(adj_ref[...], h_ref[...],
                            preferred_element_type=jnp.float32)


# ---------------------------------------------------------------------------
# Wrapper
# ---------------------------------------------------------------------------
def gcn_conv_dgl(x, weight, bias, adj, *, tile=1024,
                 agg_dtype=jnp.bfloat16,
                 h_resident_budget_bytes=4 * 1024 * 1024):
    """out = adj @ (x @ weight.T + bias)"""
    N, in_dim = x.shape
    out_dim = weight.shape[0]

    # Lane-dense output: pad out_dim up to a multiple of 128.
    out_pad = _round_up(out_dim, 128)

    # Node-axis tile (same for dst rows and src cols of adj).
    tm, n_pad = _pick_node_tile(N, tile)
    tk = tm

    # ---- prepare inputs (pad only when strictly necessary) -----------------
    if n_pad == N:
        x_p = x
        adj_p = adj if adj.dtype == agg_dtype else adj.astype(agg_dtype)
    else:
        # Zero-padded rows of x yield h == bias, but the matching adj columns
        # are zero so they contribute nothing to the result.
        x_p = jnp.zeros((n_pad, in_dim), x.dtype).at[:N, :].set(x)
        adj_p = (jnp.zeros((n_pad, n_pad), agg_dtype)
                 .at[:N, :N].set(adj.astype(agg_dtype)))

    wt_p = jnp.zeros((in_dim, out_pad), weight.dtype).at[:, :out_dim].set(weight.T)
    b_p = jnp.zeros((1, out_pad), bias.dtype).at[0, :out_dim].set(bias)

    # ---- Linear: h = x @ W_t + b  (row-tiled; stored at agg_dtype) ---------
    h = pl.pallas_call(
        linear_kernel,
        out_shape=jax.ShapeDtypeStruct((n_pad, out_pad), agg_dtype),
        grid_spec=pltpu.PrefetchScalarGridSpec(
            num_scalar_prefetch=0,
            grid=(n_pad // tm,),
            in_specs=[
                pl.BlockSpec((tm, in_dim), lambda i: (i, 0)),
                pl.BlockSpec((in_dim, out_pad), lambda i: (0, 0)),
                pl.BlockSpec((1, out_pad), lambda i: (0, 0)),
            ],
            out_specs=pl.BlockSpec((tm, out_pad), lambda i: (i, 0)),
        ),
        compiler_params=pltpu.CompilerParams(
            dimension_semantics=("parallel",)
        ),
    )(x_p, wt_p, b_p)

    # ---- Aggregation: out = adj @ h  (HBM-bound on adj; bf16 tiles) --------
    h_bytes = n_pad * out_pad * jnp.dtype(agg_dtype).itemsize
    h_resident = h_bytes <= h_resident_budget_bytes

    if h_resident:
        agg_kernel = aggregate_kernel_hres
        # Constant block index: h DMA'd into VMEM once for the whole grid.
        h_spec = pl.BlockSpec((n_pad, out_pad), lambda i, k: (0, 0))
    else:
        agg_kernel = aggregate_kernel_tiled
        h_spec = pl.BlockSpec((tk, out_pad), lambda i, k: (k, 0))

    out_p = pl.pallas_call(
        agg_kernel,
        out_shape=jax.ShapeDtypeStruct((n_pad, out_pad), jnp.float32),
        grid_spec=pltpu.PrefetchScalarGridSpec(
            num_scalar_prefetch=0,
            grid=(n_pad // tm, n_pad // tk),
            in_specs=[
                pl.BlockSpec((tm, tk), lambda i, k: (i, k)),  # adj tile (streamed)
                h_spec,
            ],
            # Constant across k -> VMEM-resident f32 accumulator.
            out_specs=pl.BlockSpec((tm, out_pad), lambda i, k: (i, 0)),
        ),
        compiler_params=pltpu.CompilerParams(
            dimension_semantics=("parallel", "arbitrary"),
            vmem_limit_bytes=48 * 1024 * 1024,
        ),
    )(adj_p, h)

    # Slice off node and lane padding; return in the input dtype.
    return out_p[:N, :out_dim].astype(x.dtype)


if __name__ == "__main__":
    # Small synthetic problem: N nodes, in_dim -> out_dim
    N, in_dim, out_dim = 512, 32, 64

    key = jax.random.PRNGKey(0)
    kx, kw, kb, ka, km = jax.random.split(key, 5)

    # Deterministic parameter init (mimics nn.Linear shapes [out, in], [out])
    bound = 1.0 / jnp.sqrt(in_dim)
    weight = jax.random.uniform(kw, (out_dim, in_dim), jnp.float32, -bound, bound)
    bias = jax.random.uniform(kb, (out_dim,), jnp.float32, -bound, bound)

    # Node features
    x = jax.random.normal(kx, (N, in_dim), jnp.float32)

    # Dense weighted adjacency: random sparse pattern with random edge weights
    edge_w = jax.random.uniform(ka, (N, N), jnp.float32)
    mask = (jax.random.uniform(km, (N, N)) < 0.1).astype(jnp.float32)
    adj = edge_w * mask  # adj[dst, src] = edge weight (0 if no edge)

    # TODO(synk): for genuinely sparse graphs a CSR/edge-list variant with
    # scalar-prefetched row offsets would avoid the dense O(N^2) adjacency.
    out = gcn_conv_dgl(x, weight, bias, adj)
    out = jax.block_until_ready(out)

    # Pure-JAX f32 reference check (kernel uses bf16 adj/h -> loosen tolerance)
    ref = adj @ (x @ weight.T + bias)
    assert out.shape == (N, out_dim)
    max_err = float(jnp.max(jnp.abs(out - ref)))
    assert jnp.allclose(out, ref, atol=1e-1, rtol=2e-2), max_err

    print("KERNEL_OK")
</pallas_src>

<mosaic_0001>
module attributes {stable_mosaic.version = 11 : i64} {
  func.func @linear_kernel(%arg0: i32, %arg1: memref<512x32xf32, #tpu.memory_space<vmem>>, %arg2: memref<32x128xf32, #tpu.memory_space<vmem>>, %arg3: memref<1x128xf32, #tpu.memory_space<vmem>>, %arg4: memref<512x128xbf16, #tpu.memory_space<vmem>>) attributes {dimension_semantics = [#tpu.dimension_semantics<parallel>], iteration_bounds = array<i64: 1>, scalar_prefetch = 0 : i64, scratch_operands = 0 : i64, tpu.core_type = #tpu.core_type<tc>, window_params = [{transform_indices = @transform_0, window_bounds = array<i64: 512, 32>}, {pipeline_mode = #tpu.pipeline_mode<synchronous>, transform_indices = @transform_1, window_bounds = array<i64: 32, 128>}, {pipeline_mode = #tpu.pipeline_mode<synchronous>, transform_indices = @transform_2, window_bounds = array<i64: 1, 128>}, {transform_indices = @transform_3, window_bounds = array<i64: 512, 128>}]} {
    %c0 = arith.constant 0 : index
    %c0_0 = arith.constant 0 : index
    %0 = vector.load %arg1[%c0, %c0_0] : memref<512x32xf32, #tpu.memory_space<vmem>>, vector<512x32xf32>
    %c0_1 = arith.constant 0 : index
    %c0_2 = arith.constant 0 : index
    %1 = vector.load %arg2[%c0_1, %c0_2] : memref<32x128xf32, #tpu.memory_space<vmem>>, vector<32x128xf32>
    %cst = arith.constant dense<0.000000e+00> : vector<512x128xf32>
    %2 = tpu.matmul %0, %1, %cst {dimension_numbers = #tpu.dot_dimension_numbers<[1], [0], [0], [1], [0, 0, 1, 1], [], []>} : vector<512x32xf32>, vector<32x128xf32>, vector<512x128xf32> -> vector<512x128xf32>
    %c0_3 = arith.constant 0 : index
    %c0_4 = arith.constant 0 : index
    %3 = vector.load %arg3[%c0_3, %c0_4] : memref<1x128xf32, #tpu.memory_space<vmem>>, vector<1x128xf32>
    %4 = vector.broadcast %3 : vector<1x128xf32> to vector<512x128xf32>
    %5 = arith.addf %2, %4 : vector<512x128xf32>
    %6 = arith.truncf %5 : vector<512x128xf32> to vector<512x128xbf16>
    %c0_5 = arith.constant 0 : index
    %c0_6 = arith.constant 0 : index
    %7 = vector.load %arg4[%c0_5, %c0_6] : memref<512x128xbf16, #tpu.memory_space<vmem>>, vector<512x128xbf16>
    tpu.vector_store %arg4[%c0_5, %c0_6], %6 {strides = array<i32>} : memref<512x128xbf16, #tpu.memory_space<vmem>>, vector<512x128xbf16>,
    return
  }
  func.func @transform_0(%arg0: i32) -> (i32, i32) {
    %c0_i32 = arith.constant 0 : i32
    %c0_i32_0 = arith.constant 0 : i32
    return %arg0, %c0_i32 : i32, i32
  }
  func.func @transform_1(%arg0: i32) -> (i32, i32) {
    %c0_i32 = arith.constant 0 : i32
    %c0_i32_0 = arith.constant 0 : i32
    %c0_i32_1 = arith.constant 0 : i32
    return %c0_i32, %c0_i32_0 : i32, i32
  }
  func.func @transform_2(%arg0: i32) -> (i32, i32) {
    %c0_i32 = arith.constant 0 : i32
    %c0_i32_0 = arith.constant 0 : i32
    %c0_i32_1 = arith.constant 0 : i32
    return %c0_i32, %c0_i32_0 : i32, i32
  }
  func.func @transform_3(%arg0: i32) -> (i32, i32) {
    %c0_i32 = arith.constant 0 : i32
    %c0_i32_0 = arith.constant 0 : i32
    return %arg0, %c0_i32 : i32, i32
  }
}

</mosaic_0001>

<llo_original>
// kernel: tpu_custom_call.1
$region0: #{tpu_custom_call.1}
  #allocation0 [shape = 'u32[]', space=smem, size = 0x4, offset = 0x4, fixed_abs, tag = 'smem constant byte address 0x4 - core index']
  #allocation1 [shape = 'u32[144,128]{1,0:T(1,128)}', space=vmem, size = 0x12000, scoped, tag = 'internal scratch']
  %s0 = inlined_call_operand.vmem [shape: f32[512,32], index: 0, kind: input, shape index: {}]
  %s1 = inlined_call_operand.vmem [shape: f32[32,128], index: 1, kind: input, shape index: {}]
  %s2 = inlined_call_operand.vmem [shape: f32[1,128], index: 2, kind: input, shape index: {}]
  %s3 = inlined_call_operand.hbm [shape: bf16[512,128], index: 3, kind: output, shape index: {}]
  %s4 = sld [smem:[#allocation0]]
  $region22: #{tpu_custom_call.1} parent=0
    _
  %s6 = ssub.s32 1, %s4
  %s7 = scalar_select 0, %s6, %s4
  $region1: #{tpu_custom_call.1} parent=0
    #allocation2 [shape = 'u8[131072]{0}', space=vmem, size = 0x20000, scoped, tag = 'output window, operand 0, single buffered']
    #allocation3 [shape = 's32[1]{0}', space=sflag, size = 0x4, scoped, tag = 'scoped memory for tpu_custom_call.1']
    %8 = vsyncpa [#allocation3], 0
    // Predicated region
    $region2: #{tpu_custom_call.1} parent=1 // pred_check
      _
    $region3: #{tpu_custom_call.1} parent=1 // pred_check_branch
      %10 = sbr.rel (0) target = $region5
    $region4: #{tpu_custom_call.1} parent=1 // pred_region
      _
    $region5: #{tpu_custom_call.1} parent=1 // pred_fallthru
      _
    // Predicated region
    $region6: #{tpu_custom_call.1} parent=1 // pred_check
      _
    $region7: #{tpu_custom_call.1} parent=1 // pred_check_branch
      %12 = sbr.rel (0) target = $region9
    $region8: #{tpu_custom_call.1} parent=1 // pred_region
      _
    $region9: #{tpu_custom_call.1} parent=1 // pred_fallthru
      _
    // Predicated region
    $region10: #{tpu_custom_call.1} parent=1 // pred_check
      _
    $region11: #{tpu_custom_call.1} parent=1 // pred_check_branch
      %14 = sbr.rel (0) target = $region13
    $region12: #{tpu_custom_call.1} parent=1 // pred_region
      _
    $region13: #{tpu_custom_call.1} parent=1 // pred_fallthru
      _
    %v15 = vld [vmem:[%s0] sm:$0xff]
    %v16 = vld [vmem:[%s0 + $0x8] sm:$0xff]
    %v17 = vld [vmem:[%s0 + $0x10] sm:$0xff]
    %v18 = vld [vmem:[%s0 + $0x18] sm:$0xff]
    %v19 = vld [vmem:[%s0 + $0x20] sm:$0xff]
    %v20 = vld [vmem:[%s0 + $0x28] sm:$0xff]
    %v21 = vld [vmem:[%s0 + $0x30] sm:$0xff]
    %v22 = vld [vmem:[%s0 + $0x38] sm:$0xff]
    %v23 = vld [vmem:[%s0 + $0x40] sm:$0xff]
    %v24 = vld [vmem:[%s0 + $0x48] sm:$0xff]
    %v25 = vld [vmem:[%s0 + $0x50] sm:$0xff]
    %v26 = vld [vmem:[%s0 + $0x58] sm:$0xff]
    %v27 = vld [vmem:[%s0 + $0x60] sm:$0xff]
    %v28 = vld [vmem:[%s0 + $0x68] sm:$0xff]
    %v29 = vld [vmem:[%s0 + $0x70] sm:$0xff]
    %v30 = vld [vmem:[%s0 + $0x78] sm:$0xff]
    %v31 = vld [vmem:[%s0 + $0x80] sm:$0xff]
    %v32 = vld [vmem:[%s0 + $0x88] sm:$0xff]
    %v33 = vld [vmem:[%s0 + $0x90] sm:$0xff]
    %v34 = vld [vmem:[%s0 + $0x98] sm:$0xff]
    %v35 = vld [vmem:[%s0 + $0xa0] sm:$0xff]
    %v36 = vld [vmem:[%s0 + $0xa8] sm:$0xff]
    %v37 = vld [vmem:[%s0 + $0xb0] sm:$0xff]
    %v38 = vld [vmem:[%s0 + $0xb8] sm:$0xff]
    %v39 = vld [vmem:[%s0 + $0xc0] sm:$0xff]
    %v40 = vld [vmem:[%s0 + $0xc8] sm:$0xff]
    %v41 = vld [vmem:[%s0 + $0xd0] sm:$0xff]
    %v42 = vld [vmem:[%s0 + $0xd8] sm:$0xff]
    %v43 = vld [vmem:[%s0 + $0xe0] sm:$0xff]
    %v44 = vld [vmem:[%s0 + $0xe8] sm:$0xff]
    %v45 = vld [vmem:[%s0 + $0xf0] sm:$0xff]
    %v46 = vld [vmem:[%s0 + $0xf8] sm:$0xff]
    %v47 = vld [vmem:[%s0 + $0x100] sm:$0xff]
    %v48 = vld [vmem:[%s0 + $0x108] sm:$0xff]
    %v49 = vld [vmem:[%s0 + $0x110] sm:$0xff]
    %v50 = vld [vmem:[%s0 + $0x118] sm:$0xff]
    %v51 = vld [vmem:[%s0 + $0x120] sm:$0xff]
    %v52 = vld [vmem:[%s0 + $0x128] sm:$0xff]
    %v53 = vld [vmem:[%s0 + $0x130] sm:$0xff]
    %v54 = vld [vmem:[%s0 + $0x138] sm:$0xff]
    %v55 = vld [vmem:[%s0 + $0x140] sm:$0xff]
    %v56 = vld [vmem:[%s0 + $0x148] sm:$0xff]
    %v57 = vld [vmem:[%s0 + $0x150] sm:$0xff]
    %v58 = vld [vmem:[%s0 + $0x158] sm:$0xff]
    %v59 = vld [vmem:[%s0 + $0x160] sm:$0xff]
    %v60 = vld [vmem:[%s0 + $0x168] sm:$0xff]
    %v61 = vld [vmem:[%s0 + $0x170] sm:$0xff]
    %v62 = vld [vmem:[%s0 + $0x178] sm:$0xff]
    %v63 = vld [vmem:[%s0 + $0x180] sm:$0xff]
    %v64 = vld [vmem:[%s0 + $0x188] sm:$0xff]
    %v65 = vld [vmem:[%s0 + $0x190] sm:$0xff]
    %v66 = vld [vmem:[%s0 + $0x198] sm:$0xff]
    %v67 = vld [vmem:[%s0 + $0x1a0] sm:$0xff]
    %v68 = vld [vmem:[%s0 + $0x1a8] sm:$0xff]
    %v69 = vld [vmem:[%s0 + $0x1b0] sm:$0xff]
    %v70 = vld [vmem:[%s0 + $0x1b8] sm:$0xff]
    %v71 = vld [vmem:[%s0 + $0x1c0] sm:$0xff]
    %v72 = vld [vmem:[%s0 + $0x1c8] sm:$0xff]
    %v73 = vld [vmem:[%s0 + $0x1d0] sm:$0xff]
    %v74 = vld [vmem:[%s0 + $0x1d8] sm:$0xff]
    %v75 = vld [vmem:[%s0 + $0x1e0] sm:$0xff]
    %v76 = vld [vmem:[%s0 + $0x1e8] sm:$0xff]
    %v77 = vld [vmem:[%s0 + $0x1f0] sm:$0xff]
    %v78 = vld [vmem:[%s0 + $0x1f8] sm:$0xff]
    %v79 = vld [vmem:[%s1] sm:$0xff]
    %v80 = vld [vmem:[%s1 + $0x8] sm:$0xff]
    %v81 = vld [vmem:[%s1 + $0x10] sm:$0xff]
    %v82 = vld [vmem:[%s1 + $0x18] sm:$0xff]
    %v83 = vld [vmem:[%s2] sm:$0x1]
    %v85 = vlaneseq
    %v86 = vshrl.u32 %v85, 7
    %v87 = vsub.s32 0, %v86
    %v88 = vrot.slane %v83, %v87
    %vm90 = vcmask 261120
    %v92 = vsel %vm90, %v15, 0
    %v95 = vsel %vm90, %v16, 0
    %v98 = vsel %vm90, %v17, 0
    %v101 = vsel %vm90, %v18, 0
    %v104 = vsel %vm90, %v19, 0
    %v107 = vsel %vm90, %v20, 0
    %v110 = vsel %vm90, %v21, 0
    %v113 = vsel %vm90, %v22, 0
    %v116 = vsel %vm90, %v23, 0
    %v119 = vsel %vm90, %v24, 0
    %v122 = vsel %vm90, %v25, 0
    %v125 = vsel %vm90, %v26, 0
    %v128 = vsel %vm90, %v27, 0
    %v131 = vsel %vm90, %v28, 0
    %v134 = vsel %vm90, %v29, 0
    %v137 = vsel %vm90, %v30, 0
    %v140 = vsel %vm90, %v31, 0
    %v143 = vsel %vm90, %v32, 0
    %v146 = vsel %vm90, %v33, 0
    %v149 = vsel %vm90, %v34, 0
    %v152 = vsel %vm90, %v35, 0
    %v155 = vsel %vm90, %v36, 0
    %v158 = vsel %vm90, %v37, 0
    %v161 = vsel %vm90, %v38, 0
    %v164 = vsel %vm90, %v39, 0
    %v167 = vsel %vm90, %v40, 0
    %v170 = vsel %vm90, %v41, 0
    %v173 = vsel %vm90, %v42, 0
    %v176 = vsel %vm90, %v43, 0
    %v179 = vsel %vm90, %v44, 0
    %v182 = vsel %vm90, %v45, 0
    %v185 = vsel %vm90, %v46, 0
    %v188 = vsel %vm90, %v47, 0
    %v191 = vsel %vm90, %v48, 0
    %v194 = vsel %vm90, %v49, 0
    %v197 = vsel %vm90, %v50, 0
    %v200 = vsel %vm90, %v51, 0
    %v203 = vsel %vm90, %v52, 0
    %v206 = vsel %vm90, %v53, 0
    %v209 = vsel %vm90, %v54, 0
    %v212 = vsel %vm90, %v55, 0
    %v215 = vsel %vm90, %v56, 0
    %v218 = vsel %vm90, %v57, 0
    %v221 = vsel %vm90, %v58, 0
    %v224 = vsel %vm90, %v59, 0
    %v227 = vsel %vm90, %v60, 0
    %v230 = vsel %vm90, %v61, 0
    %v233 = vsel %vm90, %v62, 0
    %v236 = vsel %vm90, %v63, 0
    %v239 = vsel %vm90, %v64, 0
    %v242 = vsel %vm90, %v65, 0
    %v245 = vsel %vm90, %v66, 0
    %v248 = vsel %vm90, %v67, 0
    %v251 = vsel %vm90, %v68, 0
    %v254 = vsel %vm90, %v69, 0
    %v257 = vsel %vm90, %v70, 0
    %v260 = vsel %vm90, %v71, 0
    %v263 = vsel %vm90, %v72, 0
    %v266 = vsel %vm90, %v73, 0
    %v269 = vsel %vm90, %v74, 0
    %v272 = vsel %vm90, %v75, 0
    %v275 = vsel %vm90, %v76, 0
    %v278 = vsel %vm90, %v77, 0
    %v281 = vsel %vm90, %v78, 0
    %283 = vmatprep.subr.mxu0 0.0
    %284 = vmatpush1.msra.mxu0 %v79
    %285 = vmatprep.subr.mxu0 0.0
    %286 = vmatpush1.msra.mxu0 %v80
    %287 = vmatprep.subr.mxu0 0.0
    %288 = vmatpush1.msra.mxu0 %v81
    %289 = vmatprep.subr.mxu0 0.0
    %290 = vmatpush1.msra.mxu0 %v82
    %291 = vmatprep.subr.mxu0 0.0
    %292 = vmatpush1.msra.mxu0 0.0
    %293 = vmatprep.subr.mxu0 0.0
    %294 = vmatpush1.msra.mxu0 0.0
    %295 = vmatprep.subr.mxu0 0.0
    %296 = vmatpush1.msra.mxu0 0.0
    %297 = vmatprep.subr.mxu0 0.0
    %298 = vmatpush1.msra.mxu0 0.0
    %299 = vmatprep.subr.mxu0 0.0
    %300 = vmatpush1.msra.mxu0 0.0
    %301 = vmatprep.subr.mxu0 0.0
    %302 = vmatpush1.msra.mxu0 0.0
    %303 = vmatprep.subr.mxu0 0.0
    %304 = vmatpush1.msra.mxu0 0.0
    %305 = vmatprep.subr.mxu0 0.0
    %306 = vmatpush1.msra.mxu0 0.0
    %307 = vmatprep.subr.mxu0 0.0
    %308 = vmatpush1.msra.mxu0 0.0
    %309 = vmatprep.subr.mxu0 0.0
    %310 = vmatpush1.msra.mxu0 0.0
    %311 = vmatprep.subr.mxu0 0.0
    %312 = vmatpush1.msra.mxu0 0.0
    %313 = vmatprep.subr.mxu0 0.0
    %314 = vmatpush1.msra.mxu0 0.0
    %315 = vmatprep.subr.mxu0 0.0
    %316 = vmatpush1.msra.mxu0 0.0
    %317 = vmatprep.subr.mxu0 0.0
    %318 = vmatpush1.msra.mxu0 0.0
    %319 = vmatprep.subr.mxu0 0.0
    %320 = vmatpush1.msra.mxu0 0.0
    %321 = vmatprep.subr.mxu0 0.0
    %322 = vmatpush1.msra.mxu0 0.0
    %323 = vmatprep.subr.mxu0 0.0
    %324 = vmatpush1.msra.mxu0 0.0
    %325 = vmatprep.subr.mxu0 0.0
    %326 = vmatpush1.msra.mxu0 0.0
    %327 = vmatprep.subr.mxu0 0.0
    %328 = vmatpush1.msra.mxu0 0.0
    %329 = vmatprep.subr.mxu0 0.0
    %330 = vmatpush1.msra.mxu0 0.0
    %331 = vmatprep.subr.mxu0 0.0
    %332 = vmatpush1.msra.mxu0 0.0
    %333 = vmatprep.subr.mxu0 0.0
    %334 = vmatpush1.msra.mxu0 0.0
    %335 = vmatprep.subr.mxu0 0.0
    %336 = vmatpush1.msra.mxu0 0.0
    %337 = vmatprep.subr.mxu0 0.0
    %338 = vmatpush1.msra.mxu0 0.0
    %339 = vmatprep.subr.mxu0 0.0
    %340 = vmatpush1.msra.mxu0 0.0
    %341 = vmatprep.subr.mxu0 0.0
    %342 = vmatpush1.msra.mxu0 0.0
    %343 = vmatprep.subr.mxu0 0.0
    %344 = vmatpush1.msra.mxu0 0.0
    %345 = vmatprep.subr.mxu0 0.0
    %346 = vmatpush1.msra.mxu0 0.0
    %347 = vmatprep.mubr.f32.mxu0 0.0
    %348 = vmatmul.mubr.f32.gmra.mrb[0].mxu0 %v92
    %v349 = vpop.f32.mrb[0].mxu0
    %v350 = vadd.f32 %v88, %v349
    %v351 = vpop.f32.mrb[0].mxu0
    %352 = vmatprep.mubr.f32.mxu0 0.0
    %353 = vmatmul.mubr.f32.gmra.mrb[0].mxu0 %v95
    %v354 = vpop.f32.mrb[0].mxu0
    %v355 = vadd.f32 %v88, %v354
    %v356 = vpop.f32.mrb[0].mxu0
    %357 = vmatprep.mubr.f32.mxu0 0.0
    %358 = vmatmul.mubr.f32.gmra.mrb[0].mxu0 %v98
    %v359 = vpop.f32.mrb[0].mxu0
    %v360 = vadd.f32 %v88, %v359
    %v361 = vpop.f32.mrb[0].mxu0
    %362 = vmatprep.mubr.f32.mxu0 0.0
    %363 = vmatmul.mubr.f32.gmra.mrb[0].mxu0 %v101
    %v364 = vpop.f32.mrb[0].mxu0
    %v365 = vadd.f32 %v88, %v364
    %v366 = vpop.f32.mrb[0].mxu0
    %367 = vmatprep.mubr.f32.mxu0 0.0
    %368 = vmatmul.mubr.f32.gmra.mrb[0].mxu0 %v104
    %v369 = vpop.f32.mrb[0].mxu0
    %v370 = vadd.f32 %v88, %v369
    %v371 = vpop.f32.mrb[0].mxu0
    %372 = vmatprep.mubr.f32.mxu0 0.0
    %373 = vmatmul.mubr.f32.gmra.mrb[0].mxu0 %v107
    %v374 = vpop.f32.mrb[0].mxu0
    %v375 = vadd.f32 %v88, %v374
    %v376 = vpop.f32.mrb[0].mxu0
    %377 = vmatprep.mubr.f32.mxu0 0.0
    %378 = vmatmul.mubr.f32.gmra.mrb[0].mxu0 %v110
    %v379 = vpop.f32.mrb[0].mxu0
    %v380 = vadd.f32 %v88, %v379
    %v381 = vpop.f32.mrb[0].mxu0
    %382 = vmatprep.mubr.f32.mxu0 0.0
    %383 = vmatmul.mubr.f32.gmra.mrb[0].mxu0 %v113
    %v384 = vpop.f32.mrb[0].mxu0
    %v385 = vadd.f32 %v88, %v384
    %v386 = vpop.f32.mrb[0].mxu0
    %387 = vmatprep.mubr.f32.mxu0 0.0
    %388 = vmatmul.mubr.f32.gmra.mrb[0].mxu0 %v116
    %v389 = vpop.f32.mrb[0].mxu0
    %v390 = vadd.f32 %v88, %v389
    %v391 = vpop.f32.mrb[0].mxu0
    %392 = vmatprep.mubr.f32.mxu0 0.0
    %393 = vmatmul.mubr.f32.gmra.mrb[0].mxu0 %v119
    %v394 = vpop.f32.mrb[0].mxu0
    %v395 = vadd.f32 %v88, %v394
    %v396 = vpop.f32.mrb[0].mxu0
    %397 = vmatprep.mubr.f32.mxu0 0.0
    %398 = vmatmul.mubr.f32.gmra.mrb[0].mxu0 %v122
    %v399 = vpop.f32.mrb[0].mxu0
    %v400 = vadd.f32 %v88, %v399
    %v401 = vpop.f32.mrb[0].mxu0
    %402 = vmatprep.mubr.f32.mxu0 0.0
    %403 = vmatmul.mubr.f32.gmra.mrb[0].mxu0 %v125
    %v404 = vpop.f32.mrb[0].mxu0
    %v405 = vadd.f32 %v88, %v404
    %v406 = vpop.f32.mrb[0].mxu0
    %407 = vmatprep.mubr.f32.mxu0 0.0
    %408 = vmatmul.mubr.f32.gmra.mrb[0].mxu0 %v128
    %v409 = vpop.f32.mrb[0].mxu0
    %v410 = vadd.f32 %v88, %v409
    %v411 = vpop.f32.mrb[0].mxu0
    %412 = vmatprep.mubr.f32.mxu0 0.0
    %413 = vmatmul.mubr.f32.gmra.mrb[0].mxu0 %v131
    %v414 = vpop.f32.mrb[0].mxu0
    %v415 = vadd.f32 %v88, %v414
    %v416 = vpop.f32.mrb[0].mxu0
    %417 = vmatprep.mubr.f32.mxu0 0.0
    %418 = vmatmul.mubr.f32.gmra.mrb[0].mxu0 %v134
    %v419 = vpop.f32.mrb[0].mxu0
    %v420 = vadd.f32 %v88, %v419
    %v421 = vpop.f32.mrb[0].mxu0
    %422 = vmatprep.mubr.f32.mxu0 0.0
    %423 = vmatmul.mubr.f32.gmra.mrb[0].mxu0 %v137
    %v424 = vpop.f32.mrb[0].mxu0
    %v425 = vadd.f32 %v88, %v424
    %v426 = vpop.f32.mrb[0].mxu0
    %427 = vmatprep.mubr.f32.mxu0 0.0
    %428 = vmatmul.mubr.f32.gmra.mrb[0].mxu0 %v140
    %v429 = vpop.f32.mrb[0].mxu0
    %v430 = vadd.f32 %v88, %v429
    %v431 = vpop.f32.mrb[0].mxu0
    %432 = vmatprep.mubr.f32.mxu0 0.0
    %433 = vmatmul.mubr.f32.gmra.mrb[0].mxu0 %v143
    %v434 = vpop.f32.mrb[0].mxu0
    %v435 = vadd.f32 %v88, %v434
    %v436 = vpop.f32.mrb[0].mxu0
    %437 = vmatprep.mubr.f32.mxu0 0.0
    %438 = vmatmul.mubr.f32.gmra.mrb[0].mxu0 %v146
    %v439 = vpop.f32.mrb[0].mxu0
    %v440 = vadd.f32 %v88, %v439
    %v441 = vpop.f32.mrb[0].mxu0
    %442 = vmatprep.mubr.f32.mxu0 0.0
    %443 = vmatmul.mubr.f32.gmra.mrb[0].mxu0 %v149
    %v444 = vpop.f32.mrb[0].mxu0
    %v445 = vadd.f32 %v88, %v444
    %v446 = vpop.f32.mrb[0].mxu0
    %447 = vmatprep.mubr.f32.mxu0 0.0
    %448 = vmatmul.mubr.f32.gmra.mrb[0].mxu0 %v152
    %v449 = vpop.f32.mrb[0].mxu0
    %v450 = vadd.f32 %v88, %v449
    %v451 = vpop.f32.mrb[0].mxu0
    %452 = vmatprep.mubr.f32.mxu0 0.0
    %453 = vmatmul.mubr.f32.gmra.mrb[0].mxu0 %v155
    %v454 = vpop.f32.mrb[0].mxu0
    %v455 = vadd.f32 %v88, %v454
    %v456 = vpop.f32.mrb[0].mxu0
    %457 = vmatprep.mubr.f32.mxu0 0.0
    %458 = vmatmul.mubr.f32.gmra.mrb[0].mxu0 %v158
    %v459 = vpop.f32.mrb[0].mxu0
    %v460 = vadd.f32 %v88, %v459
    %v461 = vpop.f32.mrb[0].mxu0
    %462 = vmatprep.mubr.f32.mxu0 0.0
    %463 = vmatmul.mubr.f32.gmra.mrb[0].mxu0 %v161
    %v464 = vpop.f32.mrb[0].mxu0
    %v465 = vadd.f32 %v88, %v464
    %v466 = vpop.f32.mrb[0].mxu0
    %467 = vmatprep.mubr.f32.mxu0 0.0
    %468 = vmatmul.mubr.f32.gmra.mrb[0].mxu0 %v164
    %v469 = vpop.f32.mrb[0].mxu0
    %v470 = vadd.f32 %v88, %v469
    %v471 = vpop.f32.mrb[0].mxu0
    %472 = vmatprep.mubr.f32.mxu0 0.0
    %473 = vmatmul.mubr.f32.gmra.mrb[0].mxu0 %v167
    %v474 = vpop.f32.mrb[0].mxu0
    %v475 = vadd.f32 %v88, %v474
    %v476 = vpop.f32.mrb[0].mxu0
    %477 = vmatprep.mubr.f32.mxu0 0.0
    %478 = vmatmul.mubr.f32.gmra.mrb[0].mxu0 %v170
    %v479 = vpop.f32.mrb[0].mxu0
    %v480 = vadd.f32 %v88, %v479
    %v481 = vpop.f32.mrb[0].mxu0
    %482 = vmatprep.mubr.f32.mxu0 0.0
    %483 = vmatmul.mubr.f32.gmra.mrb[0].mxu0 %v173
    %v484 = vpop.f32.mrb[0].mxu0
    %v485 = vadd.f32 %v88, %v484
    %v486 = vpop.f32.mrb[0].mxu0
    %487 = vmatprep.mubr.f32.mxu0 0.0
    %488 = vmatmul.mubr.f32.gmra.mrb[0].mxu0 %v176
    %v489 = vpop.f32.mrb[0].mxu0
    %v490 = vadd.f32 %v88, %v489
    %v491 = vpop.f32.mrb[0].mxu0
    %492 = vmatprep.mubr.f32.mxu0 0.0
    %493 = vmatmul.mubr.f32.gmra.mrb[0].mxu0 %v179
    %v494 = vpop.f32.mrb[0].mxu0
    %v495 = vadd.f32 %v88, %v494
    %v496 = vpop.f32.mrb[0].mxu0
    %497 = vmatprep.mubr.f32.mxu0 0.0
    %498 = vmatmul.mubr.f32.gmra.mrb[0].mxu0 %v182
    %v499 = vpop.f32.mrb[0].mxu0
    %v500 = vadd.f32 %v88, %v499
    %v501 = vpop.f32.mrb[0].mxu0
    %502 = vmatprep.mubr.f32.mxu0 0.0
    %503 = vmatmul.mubr.f32.gmra.mrb[0].mxu0 %v185
    %v504 = vpop.f32.mrb[0].mxu0
    %v505 = vadd.f32 %v88, %v504
    %v506 = vpop.f32.mrb[0].mxu0
    %507 = vmatprep.mubr.f32.mxu0 0.0
    %508 = vmatmul.mubr.f32.gmra.mrb[0].mxu0 %v188
    %v509 = vpop.f32.mrb[0].mxu0
    %v510 = vadd.f32 %v88, %v509
    %v511 = vpop.f32.mrb[0].mxu0
    %512 = vmatprep.mubr.f32.mxu0 0.0
    %513 = vmatmul.mubr.f32.gmra.mrb[0].mxu0 %v191
    %v514 = vpop.f32.mrb[0].mxu0
    %v515 = vadd.f32 %v88, %v514
    %v516 = vpop.f32.mrb[0].mxu0
    %517 = vmatprep.mubr.f32.mxu0 0.0
    %518 = vmatmul.mubr.f32.gmra.mrb[0].mxu0 %v194
    %v519 = vpop.f32.mrb[0].mxu0
    %v520 = vadd.f32 %v88, %v519
    %v521 = vpop.f32.mrb[0].mxu0
    %522 = vmatprep.mubr.f32.mxu0 0.0
    %523 = vmatmul.mubr.f32.gmra.mrb[0].mxu0 %v197
    %v524 = vpop.f32.mrb[0].mxu0
    %v525 = vadd.f32 %v88, %v524
    %v526 = vpop.f32.mrb[0].mxu0
    %527 = vmatprep.mubr.f32.mxu0 0.0
    %528 = vmatmul.mubr.f32.gmra.mrb[0].mxu0 %v200
    %v529 = vpop.f32.mrb[0].mxu0
    %v530 = vadd.f32 %v88, %v529
    %v531 = vpop.f32.mrb[0].mxu0
    %532 = vmatprep.mubr.f32.mxu0 0.0
    %533 = vmatmul.mubr.f32.gmra.mrb[0].mxu0 %v203
    %v534 = vpop.f32.mrb[0].mxu0
    %v535 = vadd.f32 %v88, %v534
    %v536 = vpop.f32.mrb[0].mxu0
    %537 = vmatprep.mubr.f32.mxu0 0.0
    %538 = vmatmul.mubr.f32.gmra.mrb[0].mxu0 %v206
    %v539 = vpop.f32.mrb[0].mxu0
    %v540 = vadd.f32 %v88, %v539
    %v541 = vpop.f32.mrb[0].mxu0
    %542 = vmatprep.mubr.f32.mxu0 0.0
    %543 = vmatmul.mubr.f32.gmra.mrb[0].mxu0 %v209
    %v544 = vpop.f32.mrb[0].mxu0
    %v545 = vadd.f32 %v88, %v544
    %v546 = vpop.f32.mrb[0].mxu0
    %547 = vmatprep.mubr.f32.mxu0 0.0
    %548 = vmatmul.mubr.f32.gmra.mrb[0].mxu0 %v212
    %v549 = vpop.f32.mrb[0].mxu0
    %v550 = vadd.f32 %v88, %v549
    %v551 = vpop.f32.mrb[0].mxu0
    %552 = vmatprep.mubr.f32.mxu0 0.0
    %553 = vmatmul.mubr.f32.gmra.mrb[0].mxu0 %v215
    %v554 = vpop.f32.mrb[0].mxu0
    %v555 = vadd.f32 %v88, %v554
    %v556 = vpop.f32.mrb[0].mxu0
    %557 = vmatprep.mubr.f32.mxu0 0.0
    %558 = vmatmul.mubr.f32.gmra.mrb[0].mxu0 %v218
    %v559 = vpop.f32.mrb[0].mxu0
    %v560 = vadd.f32 %v88, %v559
    %v561 = vpop.f32.mrb[0].mxu0
    %562 = vmatprep.mubr.f32.mxu0 0.0
    %563 = vmatmul.mubr.f32.gmra.mrb[0].mxu0 %v221
    %v564 = vpop.f32.mrb[0].mxu0
    %v565 = vadd.f32 %v88, %v564
    %v566 = vpop.f32.mrb[0].mxu0
    %567 = vmatprep.mubr.f32.mxu0 0.0
    %568 = vmatmul.mubr.f32.gmra.mrb[0].mxu0 %v224
    %v569 = vpop.f32.mrb[0].mxu0
    %v570 = vadd.f32 %v88, %v569
    %v571 = vpop.f32.mrb[0].mxu0
    %572 = vmatprep.mubr.f32.mxu0 0.0
    %573 = vmatmul.mubr.f32.gmra.mrb[0].mxu0 %v227
    %v574 = vpop.f32.mrb[0].mxu0
    %v575 = vadd.f32 %v88, %v574
    %v576 = vpop.f32.mrb[0].mxu0
    %577 = vmatprep.mubr.f32.mxu0 0.0
    %578 = vmatmul.mubr.f32.gmra.mrb[0].mxu0 %v230
    %v579 = vpop.f32.mrb[0].mxu0
    %v580 = vadd.f32 %v88, %v579
    %v581 = vpop.f32.mrb[0].mxu0
    %582 = vmatprep.mubr.f32.mxu0 0.0
    %583 = vmatmul.mubr.f32.gmra.mrb[0].mxu0 %v233
    %v584 = vpop.f32.mrb[0].mxu0
    %v585 = vadd.f32 %v88, %v584
    %v586 = vpop.f32.mrb[0].mxu0
    %587 = vmatprep.mubr.f32.mxu0 0.0
    %588 = vmatmul.mubr.f32.gmra.mrb[0].mxu0 %v236
    %v589 = vpop.f32.mrb[0].mxu0
    %v590 = vadd.f32 %v88, %v589
    %v591 = vpop.f32.mrb[0].mxu0
    %592 = vmatprep.mubr.f32.mxu0 0.0
    %593 = vmatmul.mubr.f32.gmra.mrb[0].mxu0 %v239
    %v594 = vpop.f32.mrb[0].mxu0
    %v595 = vadd.f32 %v88, %v594
    %v596 = vpop.f32.mrb[0].mxu0
    %597 = vmatprep.mubr.f32.mxu0 0.0
    %598 = vmatmul.mubr.f32.gmra.mrb[0].mxu0 %v242
    %v599 = vpop.f32.mrb[0].mxu0
    %v600 = vadd.f32 %v88, %v599
    %v601 = vpop.f32.mrb[0].mxu0
    %602 = vmatprep.mubr.f32.mxu0 0.0
    %603 = vmatmul.mubr.f32.gmra.mrb[0].mxu0 %v245
    %v604 = vpop.f32.mrb[0].mxu0
    %v605 = vadd.f32 %v88, %v604
    %v606 = vpop.f32.mrb[0].mxu0
    %607 = vmatprep.mubr.f32.mxu0 0.0
    %608 = vmatmul.mubr.f32.gmra.mrb[0].mxu0 %v248
    %v609 = vpop.f32.mrb[0].mxu0
    %v610 = vadd.f32 %v88, %v609
    %v611 = vpop.f32.mrb[0].mxu0
    %612 = vmatprep.mubr.f32.mxu0 0.0
    %613 = vmatmul.mubr.f32.gmra.mrb[0].mxu0 %v251
    %v614 = vpop.f32.mrb[0].mxu0
    %v615 = vadd.f32 %v88, %v614
    %v616 = vpop.f32.mrb[0].mxu0
    %617 = vmatprep.mubr.f32.mxu0 0.0
    %618 = vmatmul.mubr.f32.gmra.mrb[0].mxu0 %v254
    %v619 = vpop.f32.mrb[0].mxu0
    %v620 = vadd.f32 %v88, %v619
    %v621 = vpop.f32.mrb[0].mxu0
    %622 = vmatprep.mubr.f32.mxu0 0.0
    %623 = vmatmul.mubr.f32.gmra.mrb[0].mxu0 %v257
    %v624 = vpop.f32.mrb[0].mxu0
    %v625 = vadd.f32 %v88, %v624
    %v626 = vpop.f32.mrb[0].mxu0
    %627 = vmatprep.mubr.f32.mxu0 0.0
    %628 = vmatmul.mubr.f32.gmra.mrb[0].mxu0 %v260
    %v629 = vpop.f32.mrb[0].mxu0
    %v630 = vadd.f32 %v88, %v629
    %v631 = vpop.f32.mrb[0].mxu0
    %632 = vmatprep.mubr.f32.mxu0 0.0
    %633 = vmatmul.mubr.f32.gmra.mrb[0].mxu0 %v263
    %v634 = vpop.f32.mrb[0].mxu0
    %v635 = vadd.f32 %v88, %v634
    %v636 = vpop.f32.mrb[0].mxu0
    %637 = vmatprep.mubr.f32.mxu0 0.0
    %638 = vmatmul.mubr.f32.gmra.mrb[0].mxu0 %v266
    %v639 = vpop.f32.mrb[0].mxu0
    %v640 = vadd.f32 %v88, %v639
    %v641 = vpop.f32.mrb[0].mxu0
    %642 = vmatprep.mubr.f32.mxu0 0.0
    %643 = vmatmul.mubr.f32.gmra.mrb[0].mxu0 %v269
    %v644 = vpop.f32.mrb[0].mxu0
    %v645 = vadd.f32 %v88, %v644
    %v646 = vpop.f32.mrb[0].mxu0
    %647 = vmatprep.mubr.f32.mxu0 0.0
    %648 = vmatmul.mubr.f32.gmra.mrb[0].mxu0 %v272
    %v649 = vpop.f32.mrb[0].mxu0
    %v650 = vadd.f32 %v88, %v649
    %v651 = vpop.f32.mrb[0].mxu0
    %652 = vmatprep.mubr.f32.mxu0 0.0
    %653 = vmatmul.mubr.f32.gmra.mrb[0].mxu0 %v275
    %v654 = vpop.f32.mrb[0].mxu0
    %v655 = vadd.f32 %v88, %v654
    %v656 = vpop.f32.mrb[0].mxu0
    %657 = vmatprep.mubr.f32.mxu0 0.0
    %658 = vmatmul.mubr.f32.gmra.mrb[0].mxu0 %v278
    %v659 = vpop.f32.mrb[0].mxu0
    %v660 = vadd.f32 %v88, %v659
    %v661 = vpop.f32.mrb[0].mxu0
    %662 = vmatprep.mubr.f32.mxu0 0.0
    %663 = vmatmul.mubr.f32.gmra.mrb[0].mxu0 %v281
    %v664 = vpop.f32.mrb[0].mxu0
    %v665 = vadd.f32 %v88, %v664
    %v666 = vpop.f32.mrb[0].mxu0
    %667 = vdwg.mxu0
    %v668 = vpack.c.bf16 %v355, %v350
    %v669 = vpack.c.bf16 %v365, %v360
    %v670 = vpack.c.bf16 %v375, %v370
    %v671 = vpack.c.bf16 %v385, %v380
    %v672 = vpack.c.bf16 %v395, %v390
    %v673 = vpack.c.bf16 %v405, %v400
    %v674 = vpack.c.bf16 %v415, %v410
    %v675 = vpack.c.bf16 %v425, %v420
    %v676 = vpack.c.bf16 %v435, %v430
    %v677 = vpack.c.bf16 %v445, %v440
    %v678 = vpack.c.bf16 %v455, %v450
    %v679 = vpack.c.bf16 %v465, %v460
    %v680 = vpack.c.bf16 %v475, %v470
    %v681 = vpack.c.bf16 %v485, %v480
    %v682 = vpack.c.bf16 %v495, %v490
    %v683 = vpack.c.bf16 %v505, %v500
    %v684 = vpack.c.bf16 %v515, %v510
    %v685 = vpack.c.bf16 %v525, %v520
    %v686 = vpack.c.bf16 %v535, %v530
    %v687 = vpack.c.bf16 %v545, %v540
    %v688 = vpack.c.bf16 %v555, %v550
    %v689 = vpack.c.bf16 %v565, %v560
    %v690 = vpack.c.bf16 %v575, %v570
    %v691 = vpack.c.bf16 %v585, %v580
    %v692 = vpack.c.bf16 %v595, %v590
    %v693 = vpack.c.bf16 %v605, %v600
    %v694 = vpack.c.bf16 %v615, %v610
    %v695 = vpack.c.bf16 %v625, %v620
    %v696 = vpack.c.bf16 %v635, %v630
    %v697 = vpack.c.bf16 %v645, %v640
    %v698 = vpack.c.bf16 %v655, %v650
    %v699 = vpack.c.bf16 %v665, %v660
    %v732 = vunpack.c.l.b16 %v668
    %v733 = vunpack.c.h.b16 %v668
    %v734 = vunpack.c.l.b16 %v669
    %v735 = vunpack.c.h.b16 %v669
    %v736 = vunpack.c.l.b16 %v670
    %v737 = vunpack.c.h.b16 %v670
    %v738 = vunpack.c.l.b16 %v671
    %v739 = vunpack.c.h.b16 %v671
    %v740 = vunpack.c.l.b16 %v672
    %v741 = vunpack.c.h.b16 %v672
    %v742 = vunpack.c.l.b16 %v673
    %v743 = vunpack.c.h.b16 %v673
    %v744 = vunpack.c.l.b16 %v674
    %v745 = vunpack.c.h.b16 %v674
    %v746 = vunpack.c.l.b16 %v675
    %v747 = vunpack.c.h.b16 %v675
    %v748 = vunpack.c.l.b16 %v676
    %v749 = vunpack.c.h.b16 %v676
    %v750 = vunpack.c.l.b16 %v677
    %v751 = vunpack.c.h.b16 %v677
    %v752 = vunpack.c.l.b16 %v678
    %v753 = vunpack.c.h.b16 %v678
    %v754 = vunpack.c.l.b16 %v679
    %v755 = vunpack.c.h.b16 %v679
    %v756 = vunpack.c.l.b16 %v680
    %v757 = vunpack.c.h.b16 %v680
    %v758 = vunpack.c.l.b16 %v681
    %v759 = vunpack.c.h.b16 %v681
    %v760 = vunpack.c.l.b16 %v682
    %v761 = vunpack.c.h.b16 %v682
    %v762 = vunpack.c.l.b16 %v683
    %v763 = vunpack.c.h.b16 %v683
    %v764 = vunpack.c.l.b16 %v684
    %v765 = vunpack.c.h.b16 %v684
    %v766 = vunpack.c.l.b16 %v685
    %v767 = vunpack.c.h.b16 %v685
    %v768 = vunpack.c.l.b16 %v686
    %v769 = vunpack.c.h.b16 %v686
    %v770 = vunpack.c.l.b16 %v687
    %v771 = vunpack.c.h.b16 %v687
    %v772 = vunpack.c.l.b16 %v688
    %v773 = vunpack.c.h.b16 %v688
    %v774 = vunpack.c.l.b16 %v689
    %v775 = vunpack.c.h.b16 %v689
    %v776 = vunpack.c.l.b16 %v690
    %v777 = vunpack.c.h.b16 %v690
    %v778 = vunpack.c.l.b16 %v691
    %v779 = vunpack.c.h.b16 %v691
    %v780 = vunpack.c.l.b16 %v692
    %v781 = vunpack.c.h.b16 %v692
    %v782 = vunpack.c.l.b16 %v693
    %v783 = vunpack.c.h.b16 %v693
    %v784 = vunpack.c.l.b16 %v694
    %v785 = vunpack.c.h.b16 %v694
    %v786 = vunpack.c.l.b16 %v695
    %v787 = vunpack.c.h.b16 %v695
    %v788 = vunpack.c.l.b16 %v696
    %v789 = vunpack.c.h.b16 %v696
    %v790 = vunpack.c.l.b16 %v697
    %v791 = vunpack.c.h.b16 %v697
    %v792 = vunpack.c.l.b16 %v698
    %v793 = vunpack.c.h.b16 %v698
    %v794 = vunpack.c.l.b16 %v699
    %v795 = vunpack.c.h.b16 %v699
    %v796 = vpack.c.b16 %v732, %v732
    %v797 = vpack.c.b16 %v733, %v733
    %v798 = vpack.c.b16 %v734, %v734
    %v799 = vpack.c.b16 %v735, %v735
    %v800 = vpack.c.b16 %v736, %v736
    %v801 = vpack.c.b16 %v737, %v737
    %v802 = vpack.c.b16 %v738, %v738
    %v803 = vpack.c.b16 %v739, %v739
    %v804 = vpack.c.b16 %v740, %v740
    %v805 = vpack.c.b16 %v741, %v741
    %v806 = vpack.c.b16 %v742, %v742
    %v807 = vpack.c.b16 %v743, %v743
    %v808 = vpack.c.b16 %v744, %v744
    %v809 = vpack.c.b16 %v745, %v745
    %v810 = vpack.c.b16 %v746, %v746
    %v811 = vpack.c.b16 %v747, %v747
    %v812 = vpack.c.b16 %v748, %v748
    %v813 = vpack.c.b16 %v749, %v749
    %v814 = vpack.c.b16 %v750, %v750
    %v815 = vpack.c.b16 %v751, %v751
    %v816 = vpack.c.b16 %v752, %v752
    %v817 = vpack.c.b16 %v753, %v753
    %v818 = vpack.c.b16 %v754, %v754
    %v819 = vpack.c.b16 %v755, %v755
    %v820 = vpack.c.b16 %v756, %v756
    %v821 = vpack.c.b16 %v757, %v757
    %v822 = vpack.c.b16 %v758, %v758
    %v823 = vpack.c.b16 %v759, %v759
    %v824 = vpack.c.b16 %v760, %v760
    %v825 = vpack.c.b16 %v761, %v761
    %v826 = vpack.c.b16 %v762, %v762
    %v827 = vpack.c.b16 %v763, %v763
    %v828 = vpack.c.b16 %v764, %v764
    %v829 = vpack.c.b16 %v765, %v765
    %v830 = vpack.c.b16 %v766, %v766
    %v831 = vpack.c.b16 %v767, %v767
    %v832 = vpack.c.b16 %v768, %v768
    %v833 = vpack.c.b16 %v769, %v769
    %v834 = vpack.c.b16 %v770, %v770
    %v835 = vpack.c.b16 %v771, %v771
    %v836 = vpack.c.b16 %v772, %v772
    %v837 = vpack.c.b16 %v773, %v773
    %v838 = vpack.c.b16 %v774, %v774
    %v839 = vpack.c.b16 %v775, %v775
    %v840 = vpack.c.b16 %v776, %v776
    %v841 = vpack.c.b16 %v777, %v777
    %v842 = vpack.c.b16 %v778, %v778
    %v843 = vpack.c.b16 %v779, %v779
    %v844 = vpack.c.b16 %v780, %v780
    %v845 = vpack.c.b16 %v781, %v781
    %v846 = vpack.c.b16 %v782, %v782
    %v847 = vpack.c.b16 %v783, %v783
    %v848 = vpack.c.b16 %v784, %v784
    %v849 = vpack.c.b16 %v785, %v785
    %v850 = vpack.c.b16 %v786, %v786
    %v851 = vpack.c.b16 %v787, %v787
    %v852 = vpack.c.b16 %v788, %v788
    %v853 = vpack.c.b16 %v789, %v789
    %v854 = vpack.c.b16 %v790, %v790
    %v855 = vpack.c.b16 %v791, %v791
    %v856 = vpack.c.b16 %v792, %v792
    %v857 = vpack.c.b16 %v793, %v793
    %v858 = vpack.c.b16 %v794, %v794
    %v859 = vpack.c.b16 %v795, %v795
    %924 = vst [vmem:[#allocation2] sm:$0xf] %v796
    %925 = vst [vmem:[#allocation2 + $0x4] sm:$0xf] %v797
    %926 = vst [vmem:[#allocation2 + $0x8] sm:$0xf] %v798
    %927 = vst [vmem:[#allocation2 + $0xc] sm:$0xf] %v799
    %928 = vst [vmem:[#allocation2 + $0x10] sm:$0xf] %v800
    %929 = vst [vmem:[#allocation2 + $0x14] sm:$0xf] %v801
    %930 = vst [vmem:[#allocation2 + $0x18] sm:$0xf] %v802
    %931 = vst [vmem:[#allocation2 + $0x1c] sm:$0xf] %v803
    %932 = vst [vmem:[#allocation2 + $0x20] sm:$0xf] %v804
    %933 = vst [vmem:[#allocation2 + $0x24] sm:$0xf] %v805
    %934 = vst [vmem:[#allocation2 + $0x28] sm:$0xf] %v806
    %935 = vst [vmem:[#allocation2 + $0x2c] sm:$0xf] %v807
    %936 = vst [vmem:[#allocation2 + $0x30] sm:$0xf] %v808
    %937 = vst [vmem:[#allocation2 + $0x34] sm:$0xf] %v809
    %938 = vst [vmem:[#allocation2 + $0x38] sm:$0xf] %v810
    %939 = vst [vmem:[#allocation2 + $0x3c] sm:$0xf] %v811
    %940 = vst [vmem:[#allocation2 + $0x40] sm:$0xf] %v812
    %941 = vst [vmem:[#allocation2 + $0x44] sm:$0xf] %v813
    %942 = vst [vmem:[#allocation2 + $0x48] sm:$0xf] %v814
    %943 = vst [vmem:[#allocation2 + $0x4c] sm:$0xf] %v815
    %944 = vst [vmem:[#allocation2 + $0x50] sm:$0xf] %v816
    %945 = vst [vmem:[#allocation2 + $0x54] sm:$0xf] %v817
    %946 = vst [vmem:[#allocation2 + $0x58] sm:$0xf] %v818
    %947 = vst [vmem:[#allocation2 + $0x5c] sm:$0xf] %v819
    %948 = vst [vmem:[#allocation2 + $0x60] sm:$0xf] %v820
    %949 = vst [vmem:[#allocation2 + $0x64] sm:$0xf] %v821
    %950 = vst [vmem:[#allocation2 + $0x68] sm:$0xf] %v822
    %951 = vst [vmem:[#allocation2 + $0x6c] sm:$0xf] %v823
    %952 = vst [vmem:[#allocation2 + $0x70] sm:$0xf] %v824
    %953 = vst [vmem:[#allocation2 + $0x74] sm:$0xf] %v825
    %954 = vst [vmem:[#allocation2 + $0x78] sm:$0xf] %v826
    %955 = vst [vmem:[#allocation2 + $0x7c] sm:$0xf] %v827
    %956 = vst [vmem:[#allocation2 + $0x80] sm:$0xf] %v828
    %957 = vst [vmem:[#allocation2 + $0x84] sm:$0xf] %v829
    %958 = vst [vmem:[#allocation2 + $0x88] sm:$0xf] %v830
    %959 = vst [vmem:[#allocation2 + $0x8c] sm:$0xf] %v831
    %960 = vst [vmem:[#allocation2 + $0x90] sm:$0xf] %v832
    %961 = vst [vmem:[#allocation2 + $0x94] sm:$0xf] %v833
    %962 = vst [vmem:[#allocation2 + $0x98] sm:$0xf] %v834
    %963 = vst [vmem:[#allocation2 + $0x9c] sm:$0xf] %v835
    %964 = vst [vmem:[#allocation2 + $0xa0] sm:$0xf] %v836
    %965 = vst [vmem:[#allocation2 + $0xa4] sm:$0xf] %v837
    %966 = vst [vmem:[#allocation2 + $0xa8] sm:$0xf] %v838
    %967 = vst [vmem:[#allocation2 + $0xac] sm:$0xf] %v839
    %968 = vst [vmem:[#allocation2 + $0xb0] sm:$0xf] %v840
    %969 = vst [vmem:[#allocation2 + $0xb4] sm:$0xf] %v841
    %970 = vst [vmem:[#allocation2 + $0xb8] sm:$0xf] %v842
    %971 = vst [vmem:[#allocation2 + $0xbc] sm:$0xf] %v843
    %972 = vst [vmem:[#allocation2 + $0xc0] sm:$0xf] %v844
    %973 = vst [vmem:[#allocation2 + $0xc4] sm:$0xf] %v845
    %974 = vst [vmem:[#allocation2 + $0xc8] sm:$0xf] %v846
    %975 = vst [vmem:[#allocation2 + $0xcc] sm:$0xf] %v847
    %976 = vst [vmem:[#allocation2 + $0xd0] sm:$0xf] %v848
    %977 = vst [vmem:[#allocation2 + $0xd4] sm:$0xf] %v849
    %978 = vst [vmem:[#allocation2 + $0xd8] sm:$0xf] %v850
    %979 = vst [vmem:[#allocation2 + $0xdc] sm:$0xf] %v851
    %980 = vst [vmem:[#allocation2 + $0xe0] sm:$0xf] %v852
    %981 = vst [vmem:[#allocation2 + $0xe4] sm:$0xf] %v853
    %982 = vst [vmem:[#allocation2 + $0xe8] sm:$0xf] %v854
    %983 = vst [vmem:[#allocation2 + $0xec] sm:$0xf] %v855
    %984 = vst [vmem:[#allocation2 + $0xf0] sm:$0xf] %v856
    %985 = vst [vmem:[#allocation2 + $0xf4] sm:$0xf] %v857
    %986 = vst [vmem:[#allocation2 + $0xf8] sm:$0xf] %v858
    %987 = vst [vmem:[#allocation2 + $0xfc] sm:$0xf] %v859
    // Predicated region
    $region14: #{tpu_custom_call.1} parent=1 // pred_check
      _
    $region15: #{tpu_custom_call.1} parent=1 // pred_check_branch
      %989 = sbr.rel (0) target = $region17
    $region16: #{tpu_custom_call.1} parent=1 // pred_region
      %s991 = ssub.s32 4096, 4096
      %992 = vsyncadd [#allocation3], %s991
      %s993 = sshll.u32 [#allocation2], 4
      %s994 = int_to_ptr.vmem [resolvable:$true] %s993
      %999 = dma.vmem_to_hbm [thread:$0]  %s994, 4096, %s3, [#allocation3], 64, 64, 4
    $region17: #{tpu_custom_call.1} parent=1 // pred_fallthru
      _
    // Predicated region
    $region18: #{tpu_custom_call.1} parent=1 // pred_check
      _
    $region19: #{tpu_custom_call.1} parent=1 // pred_check_branch
      %1001 = sbr.rel (0) target = $region21
    $region20: #{tpu_custom_call.1} parent=1 // pred_region
      %1002 = dma.done [#allocation3], 4096
    $region21: #{tpu_custom_call.1} parent=1 // pred_fallthru
      _
    %1003 = vsyncpa [#allocation3], 1

</llo_original>
